<compile_context>
chip_gen: v6e
topology: v6e:2x2x1
jax: 0.10.0
libtpu: 0.0.40
codegen_flags: <defaults>
</compile_context>

<pallas_src>
import functools

import jax
import jax.numpy as jnp
from jax.experimental import pallas as pl
from jax.experimental.pallas import tpu as pltpu


def _make_kernel(K, d, C, TL, HW):
    """Kernel over one (batch, time-tile) grid point; channels on sublanes."""

    def kernel(xc_ref, xh_ref, w1_ref, b1_ref, w2_ref, b2_ref, o_ref):
        t = pl.program_id(1)

        xc = xc_ref[0]                                    # (C, TL)  current tile
        halo = xh_ref[0]                                  # (C, HW)  tail of prev tile
        # First time-tile: the "history" is the causal zero pad.
        halo = halo * (t > 0).astype(halo.dtype)
        xx = jnp.concatenate([halo, xc], axis=1)          # (C, HW+TL), aligned lane concat

        # im2col: stack the K dilated taps on the sublane axis -> (K*C, TL).
        # Tap k needs x[:, t0 + i - (K-1-k)*d] == xx[:, HW - (K-1-k)*d + i].
        taps = [xx[:, HW - (K - 1 - k) * d: HW - (K - 1 - k) * d + TL]
                for k in range(K)]
        xs = jnp.concatenate(taps, axis=0)                # (K*C, TL)

        # conv1: a single MXU matmul, contraction dim K*C (not just C).
        y1 = jnp.dot(w1_ref[...], xs, preferred_element_type=jnp.float32)  # (C, TL)
        y1 = y1 + b1_ref[...]                             # (C, 1) broadcast over lanes
        a1 = jnp.where(y1 >= 0, y1, 0.1 * y1)             # LeakyReLU(0.1), f32

        # conv2: kernel_size=1 causal conv == channel-mixing matmul.
        y2 = jnp.dot(w2_ref[...], a1.astype(w2_ref.dtype),
                     preferred_element_type=jnp.float32)                   # (C, TL)
        y2 = y2 + b2_ref[...]

        # dropout(p=0.0) is the identity; residual add in f32, lane-dense NCL store.
        o_ref[0] = (xc.astype(jnp.float32) + y2).astype(o_ref.dtype)

    return kernel


def _weight_norm(v, g):
    # torch.nn.utils.weight_norm, dim=0: per-out-channel norm over (in, k).
    # (No epsilon, matching PyTorch semantics.)
    return g * v / jnp.sqrt(jnp.sum(v * v, axis=(1, 2), keepdims=True))


@functools.partial(
    jax.jit, static_argnames=("kernel_size", "dilation", "tl", "compute_dtype"))
def causal_residual_block1d(x, v1, g1, b1, v2, g2, b2, *,
                            kernel_size, dilation=1, tl=512,
                            compute_dtype=jnp.float32):
    """x: (N, C, L) float32 in PyTorch NCL layout. Returns (N, C, L) float32."""
    N, C, L = x.shape
    K = kernel_size
    d = dilation

    HW = 128                                  # halo block width (one lane-dense tile)
    assert d * (K - 1) <= HW, "causal history d*(K-1) must fit in one 128-wide halo"
    assert tl % HW == 0
    R = tl // HW

    # ---- weight norm + kernel-side weight layouts (tiny; plain XLA) -------------
    w1 = _weight_norm(v1, g1)                                     # (C, C, K)
    w2 = _weight_norm(v2, g2)                                     # (C, C, 1)
    w1s = jnp.transpose(w1, (0, 2, 1)).reshape(C, K * C)          # [co, k*C + ci]
    w1s = w1s.astype(compute_dtype)
    w2s = w2[:, :, 0].astype(compute_dtype)                       # (C, C)
    b1c = b1.reshape(C, 1).astype(jnp.float32)
    b2c = b2.reshape(C, 1).astype(jnp.float32)

    # ---- pad time up to a tile multiple (causal => padded cols never leak back) -
    Lp = ((L + tl - 1) // tl) * tl
    xc = x.astype(compute_dtype)
    if Lp != L:
        xc = jnp.pad(xc, ((0, 0), (0, 0), (0, Lp - L)))

    # VMEM per grid step (pipeline double-buffers x/halo/out; weights resident):
    #   ~ 2*C*tl*itemsize (x) + 2*C*HW*itemsize (halo) + 2*C*tl*4 (out) + C*(K+1)*C*itemsize
    # e.g. C=512, tl=512, K=7, f32: ~5 MiB -> fits v7x's 32 MiB scoped default;
    # grow tl only while this stays <= ~24 MiB (or raise vmem_limit_bytes).
    grid = (N, Lp // tl)
    kernel = _make_kernel(K, d, C, tl, HW)

    out = pl.pallas_call(
        kernel,
        out_shape=jax.ShapeDtypeStruct((N, C, Lp), jnp.float32),
        grid_spec=pltpu.PrefetchScalarGridSpec(
            num_scalar_prefetch=0,
            grid=grid,
            in_specs=[
                # current time tile, NCL as given, time on lanes (lane-dense).
                pl.BlockSpec((1, C, tl), lambda n, t: (n, 0, t)),
                # last HW columns of the *previous* tile (causal halo); at t==0 it
                # aliases tile 0 and is masked to zero inside the kernel.
                pl.BlockSpec((1, C, HW),
                             lambda n, t: (n, 0, jnp.maximum(t * R - 1, 0))),
                # weights / biases: constant block index -> DMA'd once, kept
                # resident (pipeline skips the re-copy when the index repeats).
                pl.BlockSpec((C, K * C), lambda n, t: (0, 0)),
                pl.BlockSpec((C, 1), lambda n, t: (0, 0)),
                pl.BlockSpec((C, C), lambda n, t: (0, 0)),
                pl.BlockSpec((C, 1), lambda n, t: (0, 0)),
            ],
            # output written directly in NCL, lane-dense (tl multiple of 128).
            out_specs=pl.BlockSpec((1, C, tl), lambda n, t: (n, 0, t)),
        ),
        compiler_params=pltpu.CompilerParams(
            dimension_semantics=("parallel", "parallel")),
    )(xc, xc, w1s, b1c, w2s, b2c)

    return out[:, :, :L]


# ------------------------- pure-JAX reference (f32) ------------------------------
def _reference(x, v1, g1, b1, v2, g2, b2, K, d):
    N, C, L = x.shape
    hi = jax.lax.Precision.HIGHEST
    w1 = _weight_norm(v1, g1)
    w2 = _weight_norm(v2, g2)
    y1 = jnp.zeros((N, C, L), jnp.float32)
    for k in range(K):
        s = (K - 1 - k) * d
        xs = jnp.pad(x, ((0, 0), (0, 0), (s, 0)))[:, :, :L]
        y1 = y1 + jnp.einsum('ncl,oc->nol', xs, w1[:, :, k], precision=hi)
    y1 = y1 + b1[None, :, None]
    a1 = jnp.where(y1 >= 0, y1, 0.1 * y1)                        # LeakyReLU(0.1)
    y2 = jnp.einsum('ncl,oc->nol', a1, w2[:, :, 0], precision=hi)
    y2 = y2 + b2[None, :, None]
    return x + y2                                                 # dropout p=0 -> id


if __name__ == "__main__":
    key = jax.random.PRNGKey(0)

    def run_case(case_key, N, C, L, K, d, tl):
        ks = jax.random.split(case_key, 7)
        x = jax.random.normal(ks[0], (N, C, L), jnp.float32)
        v1 = jax.random.normal(ks[1], (C, C, K), jnp.float32) * 0.3
        g1 = jax.random.normal(ks[2], (C, 1, 1), jnp.float32) * 0.2 + 1.0
        b1 = jax.random.normal(ks[3], (C,), jnp.float32) * 0.1
        v2 = jax.random.normal(ks[4], (C, C, 1), jnp.float32) * 0.3
        g2 = jax.random.normal(ks[5], (C, 1, 1), jnp.float32) * 0.2 + 1.0
        b2 = jax.random.normal(ks[6], (C,), jnp.float32) * 0.1

        y = causal_residual_block1d(x, v1, g1, b1, v2, g2, b2,
                                    kernel_size=K, dilation=d, tl=tl)
        y = jax.block_until_ready(y)

        yr = _reference(x, v1, g1, b1, v2, g2, b2, K, d)
        assert y.shape == (N, C, L), y.shape
        err = float(jnp.max(jnp.abs(y - yr)))
        assert jnp.allclose(y, yr, rtol=5e-3, atol=5e-3), err

    k1, k2 = jax.random.split(key)
    # Module defaults (K=7, dilation=1); L not a tile multiple -> exercises pad/trim
    # and the cross-tile halo path (grid has 2 time tiles).
    run_case(k1, N=2, C=32, L=200, K=7, d=1, tl=128)
    # Dilated variant on a different channel count.
    run_case(k2, N=1, C=16, L=130, K=5, d=2, tl=128)
    print("KERNEL_OK")
</pallas_src>

<mosaic_0001>
module attributes {stable_mosaic.version = 11 : i64} {
  func.func @kernel(%arg0: i32, %arg1: i32, %arg2: memref<1x32x128xf32, #tpu.memory_space<vmem>>, %arg3: memref<1x32x128xf32, #tpu.memory_space<vmem>>, %arg4: memref<32x224xf32, #tpu.memory_space<vmem>>, %arg5: memref<32x1xf32, #tpu.memory_space<vmem>>, %arg6: memref<32x32xf32, #tpu.memory_space<vmem>>, %arg7: memref<32x1xf32, #tpu.memory_space<vmem>>, %arg8: memref<1x32x128xf32, #tpu.memory_space<vmem>>) attributes {dimension_semantics = [#tpu.dimension_semantics<parallel>, #tpu.dimension_semantics<parallel>], iteration_bounds = array<i64: 2, 2>, scalar_prefetch = 0 : i64, scratch_operands = 0 : i64, tpu.core_type = #tpu.core_type<tc>, window_params = [{transform_indices = @transform_0, window_bounds = array<i64: 1, 32, 128>}, {transform_indices = @transform_1, window_bounds = array<i64: 1, 32, 128>}, {pipeline_mode = #tpu.pipeline_mode<synchronous>, transform_indices = @transform_2, window_bounds = array<i64: 32, 224>}, {pipeline_mode = #tpu.pipeline_mode<synchronous>, transform_indices = @transform_3, window_bounds = array<i64: 32, 1>}, {pipeline_mode = #tpu.pipeline_mode<synchronous>, transform_indices = @transform_4, window_bounds = array<i64: 32, 32>}, {pipeline_mode = #tpu.pipeline_mode<synchronous>, transform_indices = @transform_5, window_bounds = array<i64: 32, 1>}, {transform_indices = @transform_6, window_bounds = array<i64: 1, 32, 128>}]} {
    %c0 = arith.constant 0 : index
    %c0_0 = arith.constant 0 : index
    %c0_1 = arith.constant 0 : index
    %0 = vector.load %arg2[%c0, %c0_0, %c0_1] : memref<1x32x128xf32, #tpu.memory_space<vmem>>, vector<1x32x128xf32>
    %1 = vector.shape_cast %0 : vector<1x32x128xf32> to vector<32x128xf32>
    %c0_2 = arith.constant 0 : index
    %c0_3 = arith.constant 0 : index
    %c0_4 = arith.constant 0 : index
    %2 = vector.load %arg3[%c0_2, %c0_3, %c0_4] : memref<1x32x128xf32, #tpu.memory_space<vmem>>, vector<1x32x128xf32>
    %3 = vector.shape_cast %2 : vector<1x32x128xf32> to vector<32x128xf32>
    %c0_i32 = arith.constant 0 : i32
    %4 = arith.cmpi sgt, %arg1, %c0_i32 : i32
    %5 = arith.extui %4 : i1 to i32
    %6 = arith.sitofp %5 : i32 to f32
    %7 = vector.broadcast %6 : f32 to vector<32x128xf32>
    %8 = arith.mulf %3, %7 : vector<32x128xf32>
    %9 = tpu.concatenate %8, %1 in 1 : vector<32x128xf32>, vector<32x128xf32> -> vector<32x256xf32>
    %10 = vector.extract_strided_slice %9 {offsets = [0, 122], sizes = [32, 128], strides = [1, 1]} : vector<32x256xf32> to vector<32x128xf32>
    %11 = vector.extract_strided_slice %9 {offsets = [0, 123], sizes = [32, 128], strides = [1, 1]} : vector<32x256xf32> to vector<32x128xf32>
    %12 = vector.extract_strided_slice %9 {offsets = [0, 124], sizes = [32, 128], strides = [1, 1]} : vector<32x256xf32> to vector<32x128xf32>
    %13 = vector.extract_strided_slice %9 {offsets = [0, 125], sizes = [32, 128], strides = [1, 1]} : vector<32x256xf32> to vector<32x128xf32>
    %14 = vector.extract_strided_slice %9 {offsets = [0, 126], sizes = [32, 128], strides = [1, 1]} : vector<32x256xf32> to vector<32x128xf32>
    %15 = vector.extract_strided_slice %9 {offsets = [0, 127], sizes = [32, 128], strides = [1, 1]} : vector<32x256xf32> to vector<32x128xf32>
    %16 = vector.extract_strided_slice %9 {offsets = [0, 128], sizes = [32, 128], strides = [1, 1]} : vector<32x256xf32> to vector<32x128xf32>
    %17 = tpu.concatenate %10, %11, %12, %13, %14, %15, %16 in 0 : vector<32x128xf32>, vector<32x128xf32>, vector<32x128xf32>, vector<32x128xf32>, vector<32x128xf32>, vector<32x128xf32>, vector<32x128xf32> -> vector<224x128xf32>
    %c0_5 = arith.constant 0 : index
    %c0_6 = arith.constant 0 : index
    %18 = vector.load %arg4[%c0_5, %c0_6] : memref<32x224xf32, #tpu.memory_space<vmem>>, vector<32x224xf32>
    %cst = arith.constant dense<0.000000e+00> : vector<32x128xf32>
    %19 = tpu.matmul %18, %17, %cst {dimension_numbers = #tpu.dot_dimension_numbers<[1], [0], [0], [1], [0, 0, 1, 1], [], []>} : vector<32x224xf32>, vector<224x128xf32>, vector<32x128xf32> -> vector<32x128xf32>
    %c0_7 = arith.constant 0 : index
    %c0_8 = arith.constant 0 : index
    %20 = vector.load %arg5[%c0_7, %c0_8] : memref<32x1xf32, #tpu.memory_space<vmem>>, vector<32x1xf32>
    %21 = vector.broadcast %20 : vector<32x1xf32> to vector<32x128xf32>
    %22 = arith.addf %19, %21 : vector<32x128xf32>
    %cst_9 = arith.constant 0.000000e+00 : f32
    %23 = vector.broadcast %cst_9 : f32 to vector<32x128xf32>
    %24 = arith.cmpf oge, %22, %23 : vector<32x128xf32>
    %cst_10 = arith.constant 1.000000e-01 : f32
    %25 = vector.broadcast %cst_10 : f32 to vector<32x128xf32>
    %26 = arith.mulf %25, %22 : vector<32x128xf32>
    %27 = arith.select %24, %22, %26 : vector<32x128xi1>, vector<32x128xf32>
    %c0_11 = arith.constant 0 : index
    %c0_12 = arith.constant 0 : index
    %28 = vector.load %arg6[%c0_11, %c0_12] : memref<32x32xf32, #tpu.memory_space<vmem>>, vector<32x32xf32>
    %cst_13 = arith.constant dense<0.000000e+00> : vector<32x128xf32>
    %29 = tpu.matmul %28, %27, %cst_13 {dimension_numbers = #tpu.dot_dimension_numbers<[1], [0], [0], [1], [0, 0, 1, 1], [], []>} : vector<32x32xf32>, vector<32x128xf32>, vector<32x128xf32> -> vector<32x128xf32>
    %c0_14 = arith.constant 0 : index
    %c0_15 = arith.constant 0 : index
    %30 = vector.load %arg7[%c0_14, %c0_15] : memref<32x1xf32, #tpu.memory_space<vmem>>, vector<32x1xf32>
    %31 = vector.broadcast %30 : vector<32x1xf32> to vector<32x128xf32>
    %32 = arith.addf %29, %31 : vector<32x128xf32>
    %33 = arith.addf %1, %32 : vector<32x128xf32>
    %c0_16 = arith.constant 0 : index
    %c0_17 = arith.constant 0 : index
    %c0_18 = arith.constant 0 : index
    %34 = vector.load %arg8[%c0_16, %c0_17, %c0_18] : memref<1x32x128xf32, #tpu.memory_space<vmem>>, vector<1x32x128xf32>
    %35 = vector.shape_cast %34 : vector<1x32x128xf32> to vector<32x128xf32>
    %36 = vector.shape_cast %33 : vector<32x128xf32> to vector<1x32x128xf32>
    tpu.vector_store %arg8[%c0_16, %c0_17, %c0_18], %36 {strides = array<i32>} : memref<1x32x128xf32, #tpu.memory_space<vmem>>, vector<1x32x128xf32>,
    return
  }
  func.func @transform_0(%arg0: i32, %arg1: i32) -> (i32, i32, i32) {
    %c0_i32 = arith.constant 0 : i32
    %c0_i32_0 = arith.constant 0 : i32
    return %arg0, %c0_i32, %arg1 : i32, i32, i32
  }
  func.func @transform_1(%arg0: i32, %arg1: i32) -> (i32, i32, i32) {
    %c1_i32 = arith.constant 1 : i32
    %0 = arith.muli %arg1, %c1_i32 : i32
    %c1_i32_0 = arith.constant 1 : i32
    %1 = arith.subi %0, %c1_i32_0 : i32
    %c0_i32 = arith.constant 0 : i32
    %2 = arith.maxsi %1, %c0_i32 : i32
    %c0_i32_1 = arith.constant 0 : i32
    %c0_i32_2 = arith.constant 0 : i32
    return %arg0, %c0_i32_1, %2 : i32, i32, i32
  }
  func.func @transform_2(%arg0: i32, %arg1: i32) -> (i32, i32) {
    %c0_i32 = arith.constant 0 : i32
    %c0_i32_0 = arith.constant 0 : i32
    %c0_i32_1 = arith.constant 0 : i32
    return %c0_i32, %c0_i32_0 : i32, i32
  }
  func.func @transform_3(%arg0: i32, %arg1: i32) -> (i32, i32) {
    %c0_i32 = arith.constant 0 : i32
    %c0_i32_0 = arith.constant 0 : i32
    %c0_i32_1 = arith.constant 0 : i32
    return %c0_i32, %c0_i32_0 : i32, i32
  }
  func.func @transform_4(%arg0: i32, %arg1: i32) -> (i32, i32) {
    %c0_i32 = arith.constant 0 : i32
    %c0_i32_0 = arith.constant 0 : i32
    %c0_i32_1 = arith.constant 0 : i32
    return %c0_i32, %c0_i32_0 : i32, i32
  }
  func.func @transform_5(%arg0: i32, %arg1: i32) -> (i32, i32) {
    %c0_i32 = arith.constant 0 : i32
    %c0_i32_0 = arith.constant 0 : i32
    %c0_i32_1 = arith.constant 0 : i32
    return %c0_i32, %c0_i32_0 : i32, i32
  }
  func.func @transform_6(%arg0: i32, %arg1: i32) -> (i32, i32, i32) {
    %c0_i32 = arith.constant 0 : i32
    %c0_i32_0 = arith.constant 0 : i32
    return %arg0, %c0_i32, %arg1 : i32, i32, i32
  }
}

</mosaic_0001>

<llo_original>
// kernel: causal_residual_block1d.1
$region0: #{causal_residual_block1d.1}
  #allocation0 [shape = 'u32[]', space=smem, size = 0x4, offset = 0x4, fixed_abs, tag = 'smem constant byte address 0x4 - core index']
  #allocation1 [shape = 'u32[144,128]{1,0:T(1,128)}', space=vmem, size = 0x12000, scoped, tag = 'internal scratch']
  %s0 = inlined_call_operand.vmem [shape: f32[2,32,256], index: 0, kind: input, shape index: {}, may-alias: {0,1}]
  %s1 = inlined_call_operand.vmem [shape: f32[2,32,256], index: 1, kind: input, shape index: {}, may-alias: {0,1}]
  %s2 = inlined_call_operand.vmem [shape: f32[32,224], index: 2, kind: input, shape index: {}]
  %s3 = inlined_call_operand.vmem [shape: f32[32,1], index: 3, kind: input, shape index: {}]
  %s4 = inlined_call_operand.vmem [shape: f32[32,32], index: 4, kind: input, shape index: {}]
  %s5 = inlined_call_operand.vmem [shape: f32[32,1], index: 5, kind: input, shape index: {}]
  %s6 = inlined_call_operand.hbm [shape: f32[2,32,256], index: 6, kind: output, shape index: {}]
  %s7 = sld [smem:[#allocation0]]
  $region133: #{causal_residual_block1d.1} parent=0
    _
  %s9 = ssub.s32 1, %s7
  %s10 = scalar_select 0, %s9, %s7
  $region1: #{causal_residual_block1d.1} parent=0
    #allocation2 [shape = 'u8[32768]{0}', space=vmem, size = 0x8000, scoped, tag = 'input window, operand 0']
    #allocation3 [shape = 'u8[32768]{0}', space=vmem, size = 0x8000, scoped, tag = 'input window, operand 1']
    #allocation4 [shape = 'u8[32768]{0}', space=vmem, size = 0x8000, scoped, tag = 'output window, operand 0']
    #allocation5 [shape = 's32[2]{0}', space=sflag, size = 0x8, scoped, tag = 'scoped memory for causal_residual_block1d.1']
    %11 = vsyncpa [#allocation5], 0
    %s12 = scalar_lea.sflag [#allocation5], 1
    %13 = vsyncpa %s12, 0
    loop: start=0, step=1, limit=6
    $region2: #{causal_residual_block1d.1} parent=1 // loop_pre_header
      _
    $region3: #{causal_residual_block1d.1} parent=1 // loop_header
      %s15 = sphi 0, %s19
      %p16 = scmp.ge.s32.totalorder %s15, 6
      %s22 = sphi 0, %s34
      %s23 = sphi 0, %s30
      %s24 = sphi 0, %s22
      %s25 = sphi 0, %s23
      %s26 = sphi 0, %s24
      %s27 = sphi 0, %s25
      %s39 = sphi 0, %s41
      %s42 = sphi 0, %s39
      %s43 = sphi 0, %s42
      %s59 = sphi 0, %s43
      %s73 = sphi 0, %s75
      %s76 = sphi 0, %s73
      %s77 = sphi 0, %s76
      %s93 = sphi 0, %s77
      %s97 = sphi 0, %s97
      %s99 = sphi 0, %s97
      %s100 = sphi 0, %s99
      %s114 = sphi 0, %s100
      %s118 = sphi 0, %s118
      %s120 = sphi 0, %s118
      %s121 = sphi 0, %s120
      %s135 = sphi 0, %s121
      %s139 = sphi 0, %s139
      %s141 = sphi 0, %s139
      %s142 = sphi 0, %s141
      %s156 = sphi 0, %s142
      %s160 = sphi 0, %s160
      %s162 = sphi 0, %s160
      %s163 = sphi 0, %s162
      %s177 = sphi 0, %s163
      %s185 = sphi 0, %s187
      %s188 = sphi 0, %s185
      %s189 = sphi 0, %s188
      %s205 = sphi 0, %s189
    $region4: #{causal_residual_block1d.1} parent=1 // loop_header_branch
      %18 = sbr.rel (%p16) target = $region8
    $region5: #{causal_residual_block1d.1} parent=1 // loop_body
      %s20 = ssub.s32 %s15, 1
      %s21 = ssub.s32 %s15, 2
      %s28 = sadd.s32 1, %s23
      %p29 = scmp.ge.s32.totalorder %s28, 2
      %s30 = scalar_select %p29, 0, %s28
      %s31 = sadd.s32 1, %s22
      %s32 = scalar_select %p29, %s31, %s22
      %p33 = scmp.ge.s32.totalorder %s32, 2
      %s34 = scalar_select %p33, 0, %s32
      %s35 = ssub.s32 %s22, %s34
      %s36 = ssub.s32 %s23, %s30
      %s37 = sor.u32 %s35, %s36
      %p38 = scmp.eq.s32.totalorder %s37, 0
      %s40 = sadd.s32 %s39, 1
      %s41 = scalar_select %p38, %s39, %s40
      %p44 = pneg %p38
      %p45 = scmp.eq.s32.totalorder %s15, 3
      %p46 = por %p44, %p45
      %p47 = scmp.ne.s32.totalorder %s39, %s42
      %p48 = scmp.eq.s32.totalorder %s15, 0
      %p49 = por %p47, %p48
      %p50 = scmp.ne.s32.totalorder %s39, %s42
      %p51 = scmp.eq.s32.totalorder %s20, 3
      %p52 = por %p50, %p51
      %p53 = scmp.ne.s32.totalorder %s42, %s43
      %p54 = scmp.eq.s32.totalorder %s20, 0
      %p55 = por %p53, %p54
      %p56 = scmp.ne.s32.totalorder %s42, %s43
      %p57 = scmp.eq.s32.totalorder %s21, 3
      %p58 = por %p56, %p57
      %p60 = scmp.ne.s32.totalorder %s43, %s59
      %p61 = scmp.eq.s32.totalorder %s21, 0
      %p62 = por %p60, %p61
      %s63 = ssub.s32 %s23, 1
      %p64 = scmp.gt.s32.totalorder %s63, 0
      %s65 = scalar_select %p64, %s63, 0
      %s66 = ssub.s32 %s30, 1
      %p67 = scmp.gt.s32.totalorder %s66, 0
      %s68 = scalar_select %p67, %s66, 0
      %s69 = ssub.s32 %s22, %s34
      %s70 = ssub.s32 %s65, %s68
      %s71 = sor.u32 %s69, %s70
      %p72 = scmp.eq.s32.totalorder %s71, 0
      %s74 = sadd.s32 %s73, 1
      %s75 = scalar_select %p72, %s73, %s74
      %p78 = pneg %p72
      %p79 = scmp.eq.s32.totalorder %s15, 3
      %p80 = por %p78, %p79
      %p81 = scmp.ne.s32.totalorder %s73, %s76
      %p82 = scmp.eq.s32.totalorder %s15, 0
      %p83 = por %p81, %p82
      %p84 = scmp.ne.s32.totalorder %s73, %s76
      %p85 = scmp.eq.s32.totalorder %s20, 3
      %p86 = por %p84, %p85
      %p87 = scmp.ne.s32.totalorder %s76, %s77
      %p88 = scmp.eq.s32.totalorder %s20, 0
      %p89 = por %p87, %p88
      %p90 = scmp.ne.s32.totalorder %s76, %s77
      %p91 = scmp.eq.s32.totalorder %s21, 3
      %p92 = por %p90, %p91
      %p94 = scmp.ne.s32.totalorder %s77, %s93
      %p95 = scmp.eq.s32.totalorder %s21, 0
      %p96 = por %p94, %p95
      %s98 = sadd.s32 %s97, 1
      %p101 = scmp.eq.s32.totalorder %s15, 3
      %p102 = scmp.ne.s32.totalorder %s97, %s99
      %p103 = scmp.eq.s32.totalorder %s15, 0
      %p104 = por %p102, %p103
      %p105 = scmp.ne.s32.totalorder %s97, %s99
      %p106 = scmp.eq.s32.totalorder %s20, 3
      %p107 = por %p105, %p106
      %p108 = scmp.ne.s32.totalorder %s99, %s100
      %p109 = scmp.eq.s32.totalorder %s20, 0
      %p110 = por %p108, %p109
      %p111 = scmp.ne.s32.totalorder %s99, %s100
      %p112 = scmp.eq.s32.totalorder %s21, 3
      %p113 = por %p111, %p112
      %p115 = scmp.ne.s32.totalorder %s100, %s114
      %p116 = scmp.eq.s32.totalorder %s21, 0
      %p117 = por %p115, %p116
      %s119 = sadd.s32 %s118, 1
      %p122 = scmp.eq.s32.totalorder %s15, 3
      %p123 = scmp.ne.s32.totalorder %s118, %s120
      %p124 = scmp.eq.s32.totalorder %s15, 0
      %p125 = por %p123, %p124
      %p126 = scmp.ne.s32.totalorder %s118, %s120
      %p127 = scmp.eq.s32.totalorder %s20, 3
      %p128 = por %p126, %p127
      %p129 = scmp.ne.s32.totalorder %s120, %s121
      %p130 = scmp.eq.s32.totalorder %s20, 0
      %p131 = por %p129, %p130
      %p132 = scmp.ne.s32.totalorder %s120, %s121
      %p133 = scmp.eq.s32.totalorder %s21, 3
      %p134 = por %p132, %p133
      %p136 = scmp.ne.s32.totalorder %s121, %s135
      %p137 = scmp.eq.s32.totalorder %s21, 0
      %p138 = por %p136, %p137
      %s140 = sadd.s32 %s139, 1
      %p143 = scmp.eq.s32.totalorder %s15, 3
      %p144 = scmp.ne.s32.totalorder %s139, %s141
      %p145 = scmp.eq.s32.totalorder %s15, 0
      %p146 = por %p144, %p145
      %p147 = scmp.ne.s32.totalorder %s139, %s141
      %p148 = scmp.eq.s32.totalorder %s20, 3
      %p149 = por %p147, %p148
      %p150 = scmp.ne.s32.totalorder %s141, %s142
      %p151 = scmp.eq.s32.totalorder %s20, 0
      %p152 = por %p150, %p151
      %p153 = scmp.ne.s32.totalorder %s141, %s142
      %p154 = scmp.eq.s32.totalorder %s21, 3
      %p155 = por %p153, %p154
      %p157 = scmp.ne.s32.totalorder %s142, %s156
      %p158 = scmp.eq.s32.totalorder %s21, 0
      %p159 = por %p157, %p158
      %s161 = sadd.s32 %s160, 1
      %p164 = scmp.eq.s32.totalorder %s15, 3
      %p165 = scmp.ne.s32.totalorder %s160, %s162
      %p166 = scmp.eq.s32.totalorder %s15, 0
      %p167 = por %p165, %p166
      %p168 = scmp.ne.s32.totalorder %s160, %s162
      %p169 = scmp.eq.s32.totalorder %s20, 3
      %p170 = por %p168, %p169
      %p171 = scmp.ne.s32.totalorder %s162, %s163
      %p172 = scmp.eq.s32.totalorder %s20, 0
      %p173 = por %p171, %p172
      %p174 = scmp.ne.s32.totalorder %s162, %s163
      %p175 = scmp.eq.s32.totalorder %s21, 3
      %p176 = por %p174, %p175
      %p178 = scmp.ne.s32.totalorder %s163, %s177
      %p179 = scmp.eq.s32.totalorder %s21, 0
      %p180 = por %p178, %p179
      %s181 = ssub.s32 %s22, %s34
      %s182 = ssub.s32 %s23, %s30
      %s183 = sor.u32 %s181, %s182
      %p184 = scmp.eq.s32.totalorder %s183, 0
      %s186 = sadd.s32 %s185, 1
      %s187 = scalar_select %p184, %s185, %s186
      %p190 = pneg %p184
      %p191 = scmp.eq.s32.totalorder %s15, 3
      %p192 = por %p190, %p191
      %p193 = scmp.ne.s32.totalorder %s185, %s188
      %p194 = scmp.eq.s32.totalorder %s15, 0
      %p195 = por %p193, %p194
      %p196 = scmp.ne.s32.totalorder %s185, %s188
      %p197 = scmp.eq.s32.totalorder %s20, 3
      %p198 = por %p196, %p197
      %p199 = scmp.ne.s32.totalorder %s188, %s189
      %p200 = scmp.eq.s32.totalorder %s20, 0
      %p201 = por %p199, %p200
      %p202 = scmp.ne.s32.totalorder %s188, %s189
      %p203 = scmp.eq.s32.totalorder %s21, 3
      %p204 = por %p202, %p203
      %p206 = scmp.ne.s32.totalorder %s189, %s205
      %p207 = scmp.eq.s32.totalorder %s21, 0
      %p208 = por %p206, %p207
      %p209 = scmp.le.s32.totalorder 1, %s15
      %p210 = scmp.lt.s32.totalorder %s15, 5
      %p211 = pnand %p209, %p210
      %p212 = pneg %p211
      // Predicated region
      $region9: #{causal_residual_block1d.1} parent=5 // pred_check
        _
      $region10: #{causal_residual_block1d.1} parent=5 // pred_check_branch
        %214 = sbr.rel (%p211) target = $region12
      $region11: #{causal_residual_block1d.1} parent=5 // pred_region
        %s215 = ssub.s32 %s15, 1
        // Predicated region
        $region13: #{causal_residual_block1d.1} parent=11 // pred_check
          %p216 = pneg %p110
        $region14: #{causal_residual_block1d.1} parent=11 // pred_check_branch
          %218 = sbr.rel (%p216) target = $region16
        $region15: #{causal_residual_block1d.1} parent=11 // pred_region
          _
        $region16: #{causal_residual_block1d.1} parent=11 // pred_fallthru
          _
        // Predicated region
        $region17: #{causal_residual_block1d.1} parent=11 // pred_check
          %p219 = pneg %p131
        $region18: #{causal_residual_block1d.1} parent=11 // pred_check_branch
          %221 = sbr.rel (%p219) target = $region20
        $region19: #{causal_residual_block1d.1} parent=11 // pred_region
          _
        $region20: #{causal_residual_block1d.1} parent=11 // pred_fallthru
          _
        // Predicated region
        $region21: #{causal_residual_block1d.1} parent=11 // pred_check
          %p222 = pneg %p152
        $region22: #{causal_residual_block1d.1} parent=11 // pred_check_branch
          %224 = sbr.rel (%p222) target = $region24
        $region23: #{causal_residual_block1d.1} parent=11 // pred_region
          _
        $region24: #{causal_residual_block1d.1} parent=11 // pred_fallthru
          _
        // Predicated region
        $region25: #{causal_residual_block1d.1} parent=11 // pred_check
          %p225 = pneg %p173
        $region26: #{causal_residual_block1d.1} parent=11 // pred_check_branch
          %227 = sbr.rel (%p225) target = $region28
        $region27: #{causal_residual_block1d.1} parent=11 // pred_region
          _
        $region28: #{causal_residual_block1d.1} parent=11 // pred_fallthru
          _
      $region12: #{causal_residual_block1d.1} parent=5 // pred_fallthru
        _
      %p228 = scmp.lt.s32.totalorder %s15, 4
      // Predicated region
      $region29: #{causal_residual_block1d.1} parent=5 // pred_check
        %p229 = pneg %p228
      $region30: #{causal_residual_block1d.1} parent=5 // pred_check_branch
        %231 = sbr.rel (%p229) target = $region32
      $region31: #{causal_residual_block1d.1} parent=5 // pred_region
        // Predicated region
        $region33: #{causal_residual_block1d.1} parent=31 // pred_check
          %p232 = pneg %p49
        $region34: #{causal_residual_block1d.1} parent=31 // pred_check_branch
          %234 = sbr.rel (%p232) target = $region36
        $region35: #{causal_residual_block1d.1} parent=31 // pred_region
          %s235 = sand.u32 %s39, 1
          %s236 = sand.u32 %s39, 1
          %s237 = smul.addr %s236, 32
          %s238 = scalar_lea.vmem [#allocation2], %s237
          %s239 = smul.addr %s22, 8
          %s240 = sadd.s32 %s23, %s239
          %s241 = smul.addr %s240, 8
          %s242 = scalar_lea.vmem %s0, %s241
          // Predicated region
          $region37: #{causal_residual_block1d.1} parent=35 // pred_check
            _
          $region38: #{causal_residual_block1d.1} parent=35 // pred_check_branch
            %244 = sbr.rel (0) target = $region40
          $region39: #{causal_residual_block1d.1} parent=35 // pred_region
            // Predicated region
            $region41: #{causal_residual_block1d.1} parent=39 // pred_check
              _
            $region42: #{causal_residual_block1d.1} parent=39 // pred_check_branch
              %246 = sbr.rel (0) target = $region44
            $region43: #{causal_residual_block1d.1} parent=39 // pred_region
              // Predicated region
              $region56: #{causal_residual_block1d.1} parent=43 // pred_check
                _
              $region57: #{causal_residual_block1d.1} parent=43 // pred_check_branch
                %268 = sbr.rel (0) target = $region59
              $region58: #{causal_residual_block1d.1} parent=43 // pred_region
                loop: start=0, step=1, limit=1
                $region60: #{causal_residual_block1d.1} parent=58 // loop_pre_header
                  _
                $region61: #{causal_residual_block1d.1} parent=58 // loop_header
                  %s270 = sphi 0, %s274
                  %p271 = scmp.ge.s32.totalorder %s270, 1
                  %s275 = sphi %s242, %s242
                  %s276 = sphi %s238, %s238
                $region62: #{causal_residual_block1d.1} parent=58 // loop_header_branch
                  %273 = sbr.rel (%p271) target = $region66
                $region63: #{causal_residual_block1d.1} parent=58 // loop_body
                  %v277 = vld [vmem:[%s275] sm:$0xff]
                  %278 = vst [vmem:[%s276] sm:$0xff] %v277
                  %v279 = vld [vmem:[%s275 + $0x10] sm:$0xff]
                  %280 = vst [vmem:[%s276 + $0x8] sm:$0xff] %v279
                  %v281 = vld [vmem:[%s275 + $0x20] sm:$0xff]
                  %282 = vst [vmem:[%s276 + $0x10] sm:$0xff] %v281
                  %v283 = vld [vmem:[%s275 + $0x30] sm:$0xff]
                  %284 = vst [vmem:[%s276 + $0x18] sm:$0xff] %v283
                $region64: #{causal_residual_block1d.1} parent=58 // loop_footer
                  %s274 = sadd.s32 1, %s270
                $region65: #{causal_residual_block1d.1} parent=58 // loop_footer_branch
                  %269 = sbr.rel target = $region61
                $region66: #{causal_residual_block1d.1} parent=58 // loop_exit
                  _
              $region59: #{causal_residual_block1d.1} parent=43 // pred_fallthru
                _
              // Predicated region
              $region67: #{causal_residual_block1d.1} parent=43 // pred_check
                _
              $region68: #{causal_residual_block1d.1} parent=43 // pred_check_branch
                %286 = sbr.rel target = $region70
              $region69: #{causal_residual_block1d.1} parent=43 // pred_region
                _
              $region70: #{causal_residual_block1d.1} parent=43 // pred_fallthru
                _
            $region44: #{causal_residual_block1d.1} parent=39 // pred_fallthru
              _
            // Predicated region
            $region45: #{causal_residual_block1d.1} parent=39 // pred_check
              _
            $region46: #{causal_residual_block1d.1} parent=39 // pred_check_branch
              %248 = sbr.rel target = $region48
            $region47: #{causal_residual_block1d.1} parent=39 // pred_region
              %s250 = ssub.s32 256, 1
              loop: start=0, step=1, limit=1
              $region49: #{causal_residual_block1d.1} parent=47 // loop_pre_header
                _
              $region50: #{causal_residual_block1d.1} parent=47 // loop_header
                %s252 = sphi 0, %s256
                %p253 = scmp.ge.s32.totalorder %s252, 1
                %s257 = sphi %s242, %s242
                %s258 = sphi %s238, %s238
              $region51: #{causal_residual_block1d.1} parent=47 // loop_header_branch
                %255 = sbr.rel (%p253) target = $region55
              $region52: #{causal_residual_block1d.1} parent=47 // loop_body
                %v259 = vld [vmem:[%s257] sm:%s250]
                %260 = vst [vmem:[%s258] sm:%s250] %v259
                %v261 = vld [vmem:[%s257 + $0x10] sm:%s250]
                %262 = vst [vmem:[%s258 + $0x8] sm:%s250] %v261
                %v263 = vld [vmem:[%s257 + $0x20] sm:%s250]
                %264 = vst [vmem:[%s258 + $0x10] sm:%s250] %v263
                %v265 = vld [vmem:[%s257 + $0x30] sm:%s250]
                %266 = vst [vmem:[%s258 + $0x18] sm:%s250] %v265
              $region53: #{causal_residual_block1d.1} parent=47 // loop_footer
                %s256 = sadd.s32 1, %s252
              $region54: #{causal_residual_block1d.1} parent=47 // loop_footer_branch
                %251 = sbr.rel target = $region50
              $region55: #{causal_residual_block1d.1} parent=47 // loop_exit
                _
            $region48: #{causal_residual_block1d.1} parent=39 // pred_fallthru
              _
          $region40: #{causal_residual_block1d.1} parent=35 // pred_fallthru
            _
          %287 = vnop
        $region36: #{causal_residual_block1d.1} parent=31 // pred_fallthru
          _
        // Predicated region
        $region71: #{causal_residual_block1d.1} parent=31 // pred_check
          %p288 = pneg %p83
        $region72: #{causal_residual_block1d.1} parent=31 // pred_check_branch
          %290 = sbr.rel (%p288) target = $region74
        $region73: #{causal_residual_block1d.1} parent=31 // pred_region
          %s291 = sand.u32 %s73, 1
          %s292 = sand.u32 %s73, 1
          %s293 = smul.addr %s292, 32
          %s294 = scalar_lea.vmem [#allocation3], %s293
          %s295 = ssub.s32 %s23, 1
          %p296 = scmp.gt.s32.totalorder %s295, 0
          %s297 = scalar_select %p296, %s295, 0
          %s298 = smul.addr %s22, 8
          %s299 = sadd.s32 %s297, %s298
          %s300 = smul.addr %s299, 8
          %s301 = scalar_lea.vmem %s1, %s300
          // Predicated region
          $region75: #{causal_residual_block1d.1} parent=73 // pred_check
            _
          $region76: #{causal_residual_block1d.1} parent=73 // pred_check_branch
            %303 = sbr.rel (0) target = $region78
          $region77: #{causal_residual_block1d.1} parent=73 // pred_region
            // Predicated region
            $region79: #{causal_residual_block1d.1} parent=77 // pred_check
              _
            $region80: #{causal_residual_block1d.1} parent=77 // pred_check_branch
              %305 = sbr.rel (0) target = $region82
            $region81: #{causal_residual_block1d.1} parent=77 // pred_region
              // Predicated region
              $region94: #{causal_residual_block1d.1} parent=81 // pred_check
                _
              $region95: #{causal_residual_block1d.1} parent=81 // pred_check_branch
                %327 = sbr.rel (0) target = $region97
              $region96: #{causal_residual_block1d.1} parent=81 // pred_region
                loop: start=0, step=1, limit=1
                $region98: #{causal_residual_block1d.1} parent=96 // loop_pre_header
                  _
                $region99: #{causal_residual_block1d.1} parent=96 // loop_header
                  %s329 = sphi 0, %s333
                  %p330 = scmp.ge.s32.totalorder %s329, 1
                  %s334 = sphi %s301, %s301
                  %s335 = sphi %s294, %s294
                $region100: #{causal_residual_block1d.1} parent=96 // loop_header_branch
                  %332 = sbr.rel (%p330) target = $region104
                $region101: #{causal_residual_block1d.1} parent=96 // loop_body
                  %v336 = vld [vmem:[%s334] sm:$0xff]
                  %337 = vst [vmem:[%s335] sm:$0xff] %v336
                  %v338 = vld [vmem:[%s334 + $0x10] sm:$0xff]
                  %339 = vst [vmem:[%s335 + $0x8] sm:$0xff] %v338
                  %v340 = vld [vmem:[%s334 + $0x20] sm:$0xff]
                  %341 = vst [vmem:[%s335 + $0x10] sm:$0xff] %v340
                  %v342 = vld [vmem:[%s334 + $0x30] sm:$0xff]
                  %343 = vst [vmem:[%s335 + $0x18] sm:$0xff] %v342
                $region102: #{causal_residual_block1d.1} parent=96 // loop_footer
                  %s333 = sadd.s32 1, %s329
                $region103: #{causal_residual_block1d.1} parent=96 // loop_footer_branch
                  %328 = sbr.rel target = $region99
                $region104: #{causal_residual_block1d.1} parent=96 // loop_exit
                  _
              $region97: #{causal_residual_block1d.1} parent=81 // pred_fallthru
                _
              // Predicated region
              $region105: #{causal_residual_block1d.1} parent=81 // pred_check
                _
              $region106: #{causal_residual_block1d.1} parent=81 // pred_check_branch
                %345 = sbr.rel target = $region108
              $region107: #{causal_residual_block1d.1} parent=81 // pred_region
                _
              $region108: #{causal_residual_block1d.1} parent=81 // pred_fallthru
                _
            $region82: #{causal_residual_block1d.1} parent=77 // pred_fallthru
              _
            // Predicated region
            $region83: #{causal_residual_block1d.1} parent=77 // pred_check
              _
            $region84: #{causal_residual_block1d.1} parent=77 // pred_check_branch
              %307 = sbr.rel target = $region86
            $region85: #{causal_residual_block1d.1} parent=77 // pred_region
              %s309 = ssub.s32 256, 1
              loop: start=0, step=1, limit=1
              $region87: #{causal_residual_block1d.1} parent=85 // loop_pre_header
                _
              $region88: #{causal_residual_block1d.1} parent=85 // loop_header
                %s311 = sphi 0, %s315
                %p312 = scmp.ge.s32.totalorder %s311, 1
                %s316 = sphi %s301, %s301
                %s317 = sphi %s294, %s294
              $region89: #{causal_residual_block1d.1} parent=85 // loop_header_branch
                %314 = sbr.rel (%p312) target = $region93
              $region90: #{causal_residual_block1d.1} parent=85 // loop_body
                %v318 = vld [vmem:[%s316] sm:%s309]
                %319 = vst [vmem:[%s317] sm:%s309] %v318
                %v320 = vld [vmem:[%s316 + $0x10] sm:%s309]
                %321 = vst [vmem:[%s317 + $0x8] sm:%s309] %v320
                %v322 = vld [vmem:[%s316 + $0x20] sm:%s309]
                %323 = vst [vmem:[%s317 + $0x10] sm:%s309] %v322
                %v324 = vld [vmem:[%s316 + $0x30] sm:%s309]
                %325 = vst [vmem:[%s317 + $0x18] sm:%s309] %v324
              $region91: #{causal_residual_block1d.1} parent=85 // loop_footer
                %s315 = sadd.s32 1, %s311
              $region92: #{causal_residual_block1d.1} parent=85 // loop_footer_branch
                %310 = sbr.rel target = $region88
              $region93: #{causal_residual_block1d.1} parent=85 // loop_exit
                _
            $region86: #{causal_residual_block1d.1} parent=77 // pred_fallthru
              _
          $region78: #{causal_residual_block1d.1} parent=73 // pred_fallthru
            _
          %346 = vnop
        $region74: #{causal_residual_block1d.1} parent=31 // pred_fallthru
          _
      $region32: #{causal_residual_block1d.1} parent=5 // pred_fallthru
        _
      %p347 = scmp.le.s32.totalorder 1, %s15
      %p348 = scmp.lt.s32.totalorder %s15, 5
      %p349 = pnand %p347, %p348
      %p350 = pneg %p349
      // Predicated region
      $region109: #{causal_residual_block1d.1} parent=5 // pred_check
        _
      $region110: #{causal_residual_block1d.1} parent=5 // pred_check_branch
        %352 = sbr.rel (%p349) target = $region112
      $region111: #{causal_residual_block1d.1} parent=5 // pred_region
        %s353 = ssub.s32 %s15, 1
        %s354 = sand.u32 %s42, 1
        %s355 = sand.u32 %s42, 1
        %s356 = smul.addr %s355, 32
        %s357 = scalar_lea.vmem [#allocation2], %s356
        // Predicated region
        $region113: #{causal_residual_block1d.1} parent=111 // pred_check
          %p358 = pneg %p55
        $region114: #{causal_residual_block1d.1} parent=111 // pred_check_branch
          %360 = sbr.rel (%p358) target = $region116
        $region115: #{causal_residual_block1d.1} parent=111 // pred_region
          _
        $region116: #{causal_residual_block1d.1} parent=111 // pred_fallthru
          _
        %s361 = sand.u32 %s76, 1
        %s362 = sand.u32 %s76, 1
        %s363 = smul.addr %s362, 32
        %s364 = scalar_lea.vmem [#allocation3], %s363
        // Predicated region
        $region117: #{causal_residual_block1d.1} parent=111 // pred_check
          %p365 = pneg %p89
        $region118: #{causal_residual_block1d.1} parent=111 // pred_check_branch
          %367 = sbr.rel (%p365) target = $region120
        $region119: #{causal_residual_block1d.1} parent=111 // pred_region
          _
        $region120: #{causal_residual_block1d.1} parent=111 // pred_fallthru
          _
        %s368 = sand.u32 %s42, 1
        %s369 = sand.u32 %s42, 1
        %s370 = smul.addr %s369, 32
        %s371 = scalar_lea.vmem [#allocation2], %s370
        %p372 = pneg %p55
        %p373 = pneg %p52
        %s374 = sand.u32 %s76, 1
        %s375 = sand.u32 %s76, 1
        %s376 = smul.addr %s375, 32
        %s377 = scalar_lea.vmem [#allocation3], %s376
        %p378 = pneg %p89
        %p379 = pneg %p86
        %p380 = pneg %p110
        %p381 = pneg %p107
        %p382 = pneg %p131
        %p383 = pneg %p128
        %p384 = pneg %p152
        %p385 = pneg %p149
        %p386 = pneg %p173
        %p387 = pneg %p170
        %p388 = pneg %p201
        %p389 = pneg %p198
        %s390 = sand.u32 %s188, 1
        %s391 = scalar_lea.sflag [#allocation5], %s390
        %s392 = sand.u32 %s188, 1
        %s393 = smul.addr %s392, 32
        %s394 = scalar_lea.vmem [#allocation4], %s393
        %s395 = ssub.s32 %s25, 1
        %p396 = scmp.gt.s32.totalorder %s395, 0
        %s397 = scalar_select %p396, %s395, 0
        %v398 = vld [vmem:[%s357] sm:$0xff]
        %v399 = vld [vmem:[%s357 + $0x8] sm:$0xff]
        %v400 = vld [vmem:[%s357 + $0x10] sm:$0xff]
        %v401 = vld [vmem:[%s357 + $0x18] sm:$0xff]
        %v402 = vld [vmem:[%s364] sm:$0xff]
        %v403 = vld [vmem:[%s364 + $0x8] sm:$0xff]
        %v404 = vld [vmem:[%s364 + $0x10] sm:$0xff]
        %v405 = vld [vmem:[%s364 + $0x18] sm:$0xff]
        %p406 = scmp.gt.s32.totalorder %s25, 0
        %s407 = scalar_select %p406, 1, 0
        %s408 = scvt.s32.f32 %s407
        %v409 = vstv %s408
        %v410 = vmul.f32 %v402, %v409
        %v411 = vmul.f32 %v403, %v409
        %v412 = vmul.f32 %v404, %v409
        %v413 = vmul.f32 %v405, %v409
        %422 = vrot.lane.b32.xlu0 %v410, 127
        %v423 = vpop.permute.xlu0 %422
        %424 = vrot.lane.b32.xlu0 %v398, 127
        %v425 = vpop.permute.xlu0 %424
        %426 = vrot.lane.b32.xlu0 %v411, 127
        %v427 = vpop.permute.xlu0 %426
        %428 = vrot.lane.b32.xlu0 %v399, 127
        %v429 = vpop.permute.xlu0 %428
        %430 = vrot.lane.b32.xlu0 %v412, 127
        %v431 = vpop.permute.xlu0 %430
        %432 = vrot.lane.b32.xlu0 %v400, 127
        %v433 = vpop.permute.xlu0 %432
        %434 = vrot.lane.b32.xlu0 %v413, 127
        %v435 = vpop.permute.xlu0 %434
        %436 = vrot.lane.b32.xlu0 %v401, 127
        %v437 = vpop.permute.xlu0 %436
        %vm438 = vcmask 1039360
        %v439 = vsel %vm438, %v423, %v425
        %v440 = vsel %vm438, %v427, %v429
        %v441 = vsel %vm438, %v431, %v433
        %v442 = vsel %vm438, %v435, %v437
        %443 = vrot.lane.b32.xlu0 %v410, 126
        %v444 = vpop.permute.xlu0 %443
        %445 = vrot.lane.b32.xlu0 %v398, 126
        %v446 = vpop.permute.xlu0 %445
        %447 = vrot.lane.b32.xlu0 %v411, 126
        %v448 = vpop.permute.xlu0 %447
        %449 = vrot.lane.b32.xlu0 %v399, 126
        %v450 = vpop.permute.xlu0 %449
        %451 = vrot.lane.b32.xlu0 %v412, 126
        %v452 = vpop.permute.xlu0 %451
        %453 = vrot.lane.b32.xlu0 %v400, 126
        %v454 = vpop.permute.xlu0 %453
        %455 = vrot.lane.b32.xlu0 %v413, 126
        %v456 = vpop.permute.xlu0 %455
        %457 = vrot.lane.b32.xlu0 %v401, 126
        %v458 = vpop.permute.xlu0 %457
        %vm459 = vcmask 1031168
        %v460 = vsel %vm459, %v444, %v446
        %v461 = vsel %vm459, %v448, %v450
        %v462 = vsel %vm459, %v452, %v454
        %v463 = vsel %vm459, %v456, %v458
        %464 = vrot.lane.b32.xlu0 %v410, 125
        %v465 = vpop.permute.xlu0 %464
        %466 = vrot.lane.b32.xlu0 %v398, 125
        %v467 = vpop.permute.xlu0 %466
        %468 = vrot.lane.b32.xlu0 %v411, 125
        %v469 = vpop.permute.xlu0 %468
        %470 = vrot.lane.b32.xlu0 %v399, 125
        %v471 = vpop.permute.xlu0 %470
        %472 = vrot.lane.b32.xlu0 %v412, 125
        %v473 = vpop.permute.xlu0 %472
        %474 = vrot.lane.b32.xlu0 %v400, 125
        %v475 = vpop.permute.xlu0 %474
        %476 = vrot.lane.b32.xlu0 %v413, 125
        %v477 = vpop.permute.xlu0 %476
        %478 = vrot.lane.b32.xlu0 %v401, 125
        %v479 = vpop.permute.xlu0 %478
        %vm480 = vcmask 1022976
        %v481 = vsel %vm480, %v465, %v467
        %v482 = vsel %vm480, %v469, %v471
        %v483 = vsel %vm480, %v473, %v475
        %v484 = vsel %vm480, %v477, %v479
        %485 = vrot.lane.b32.xlu0 %v410, 124
        %v486 = vpop.permute.xlu0 %485
        %487 = vrot.lane.b32.xlu0 %v398, 124
        %v488 = vpop.permute.xlu0 %487
        %489 = vrot.lane.b32.xlu0 %v411, 124
        %v490 = vpop.permute.xlu0 %489
        %491 = vrot.lane.b32.xlu0 %v399, 124
        %v492 = vpop.permute.xlu0 %491
        %493 = vrot.lane.b32.xlu0 %v412, 124
        %v494 = vpop.permute.xlu0 %493
        %495 = vrot.lane.b32.xlu0 %v400, 124
        %v496 = vpop.permute.xlu0 %495
        %497 = vrot.lane.b32.xlu0 %v413, 124
        %v498 = vpop.permute.xlu0 %497
        %499 = vrot.lane.b32.xlu0 %v401, 124
        %v500 = vpop.permute.xlu0 %499
        %vm501 = vcmask 1014784
        %v502 = vsel %vm501, %v486, %v488
        %v503 = vsel %vm501, %v490, %v492
        %v504 = vsel %vm501, %v494, %v496
        %v505 = vsel %vm501, %v498, %v500
        %506 = vrot.lane.b32.xlu0 %v410, 123
        %v507 = vpop.permute.xlu0 %506
        %508 = vrot.lane.b32.xlu0 %v398, 123
        %v509 = vpop.permute.xlu0 %508
        %510 = vrot.lane.b32.xlu0 %v411, 123
        %v511 = vpop.permute.xlu0 %510
        %512 = vrot.lane.b32.xlu0 %v399, 123
        %v513 = vpop.permute.xlu0 %512
        %514 = vrot.lane.b32.xlu0 %v412, 123
        %v515 = vpop.permute.xlu0 %514
        %516 = vrot.lane.b32.xlu0 %v400, 123
        %v517 = vpop.permute.xlu0 %516
        %518 = vrot.lane.b32.xlu0 %v413, 123
        %v519 = vpop.permute.xlu0 %518
        %520 = vrot.lane.b32.xlu0 %v401, 123
        %v521 = vpop.permute.xlu0 %520
        %vm522 = vcmask 1006592
        %v523 = vsel %vm522, %v507, %v509
        %v524 = vsel %vm522, %v511, %v513
        %v525 = vsel %vm522, %v515, %v517
        %v526 = vsel %vm522, %v519, %v521
        %527 = vrot.lane.b32.xlu0 %v398, 122
        %v528 = vpop.permute.xlu0 %527
        %529 = vrot.lane.b32.xlu0 %v399, 122
        %v530 = vpop.permute.xlu0 %529
        %531 = vrot.lane.b32.xlu0 %v400, 122
        %v532 = vpop.permute.xlu0 %531
        %533 = vrot.lane.b32.xlu0 %v401, 122
        %v534 = vpop.permute.xlu0 %533
        %v535 = vld [vmem:[%s2] sm:$0xff]
        %v536 = vld [vmem:[%s2 + $0x8] sm:$0xff]
        %v537 = vld [vmem:[%s2 + $0x10] sm:$0xff]
        %v538 = vld [vmem:[%s2 + $0x18] sm:$0xff]
        %v539 = vld [vmem:[%s2 + $0x20] sm:$0xff]
        %v540 = vld [vmem:[%s2 + $0x28] sm:$0xff]
        %v541 = vld [vmem:[%s2 + $0x30] sm:$0xff]
        %v542 = vld [vmem:[%s2 + $0x38] sm:$0xff]
        %v543 = vld [vmem:[%s3] sm:$0xff]
        %v544 = vld [vmem:[%s3 + $0x8] sm:$0xff]
        %v545 = vld [vmem:[%s3 + $0x10] sm:$0xff]
        %v546 = vld [vmem:[%s3 + $0x18] sm:$0xff]
        %548 = vset.pattern.permute.xlu0 0
        %549 = vperm.xlu0 %548, %v543
        %v550 = vpop.permute.xlu0 %549
        %553 = vset.pattern.permute.xlu0 0
        %554 = vperm.xlu0 %553, %v544
        %v555 = vpop.permute.xlu0 %554
        %558 = vset.pattern.permute.xlu0 0
        %559 = vperm.xlu0 %558, %v545
        %v560 = vpop.permute.xlu0 %559
        %563 = vset.pattern.permute.xlu0 0
        %564 = vperm.xlu0 %563, %v546
        %v565 = vpop.permute.xlu0 %564
        %567 = vrot.lane.b32.xlu0 %v410, 6
        %v568 = vpop.permute.xlu0 %567
        %569 = vrot.lane.b32.xlu0 %v398, 6
        %v570 = vpop.permute.xlu0 %569
        %571 = vrot.lane.b32.xlu0 %v411, 6
        %v572 = vpop.permute.xlu0 %571
        %573 = vrot.lane.b32.xlu0 %v399, 6
        %v574 = vpop.permute.xlu0 %573
        %575 = vrot.lane.b32.xlu0 %v412, 6
        %v576 = vpop.permute.xlu0 %575
        %577 = vrot.lane.b32.xlu0 %v400, 6
        %v578 = vpop.permute.xlu0 %577
        %579 = vrot.lane.b32.xlu0 %v413, 6
        %v580 = vpop.permute.xlu0 %579
        %581 = vrot.lane.b32.xlu0 %v401, 6
        %v582 = vpop.permute.xlu0 %581
        %583 = vrot.lane.b32.xlu0 %v439, 6
        %v584 = vpop.permute.xlu0 %583
        %585 = vrot.lane.b32.xlu0 %v425, 6
        %v586 = vpop.permute.xlu0 %585
        %587 = vrot.lane.b32.xlu0 %v440, 6
        %v588 = vpop.permute.xlu0 %587
        %589 = vrot.lane.b32.xlu0 %v429, 6
        %v590 = vpop.permute.xlu0 %589
        %591 = vrot.lane.b32.xlu0 %v441, 6
        %v592 = vpop.permute.xlu0 %591
        %593 = vrot.lane.b32.xlu0 %v433, 6
        %v594 = vpop.permute.xlu0 %593
        %595 = vrot.lane.b32.xlu0 %v442, 6
        %v596 = vpop.permute.xlu0 %595
        %597 = vrot.lane.b32.xlu0 %v437, 6
        %v598 = vpop.permute.xlu0 %597
        %599 = vrot.lane.b32.xlu0 %v460, 6
        %v600 = vpop.permute.xlu0 %599
        %601 = vrot.lane.b32.xlu0 %v446, 6
        %v602 = vpop.permute.xlu0 %601
        %603 = vrot.lane.b32.xlu0 %v461, 6
        %v604 = vpop.permute.xlu0 %603
        %605 = vrot.lane.b32.xlu0 %v450, 6
        %v606 = vpop.permute.xlu0 %605
        %607 = vrot.lane.b32.xlu0 %v462, 6
        %v608 = vpop.permute.xlu0 %607
        %609 = vrot.lane.b32.xlu0 %v454, 6
        %v610 = vpop.permute.xlu0 %609
        %611 = vrot.lane.b32.xlu0 %v463, 6
        %v612 = vpop.permute.xlu0 %611
        %613 = vrot.lane.b32.xlu0 %v458, 6
        %v614 = vpop.permute.xlu0 %613
        %615 = vrot.lane.b32.xlu0 %v481, 6
        %v616 = vpop.permute.xlu0 %615
        %617 = vrot.lane.b32.xlu0 %v467, 6
        %v618 = vpop.permute.xlu0 %617
        %619 = vrot.lane.b32.xlu0 %v482, 6
        %v620 = vpop.permute.xlu0 %619
        %621 = vrot.lane.b32.xlu0 %v471, 6
        %v622 = vpop.permute.xlu0 %621
        %623 = vrot.lane.b32.xlu0 %v483, 6
        %v624 = vpop.permute.xlu0 %623
        %625 = vrot.lane.b32.xlu0 %v475, 6
        %v626 = vpop.permute.xlu0 %625
        %627 = vrot.lane.b32.xlu0 %v484, 6
        %v628 = vpop.permute.xlu0 %627
        %629 = vrot.lane.b32.xlu0 %v479, 6
        %v630 = vpop.permute.xlu0 %629
        %631 = vrot.lane.b32.xlu0 %v502, 6
        %v632 = vpop.permute.xlu0 %631
        %633 = vrot.lane.b32.xlu0 %v488, 6
        %v634 = vpop.permute.xlu0 %633
        %635 = vrot.lane.b32.xlu0 %v503, 6
        %v636 = vpop.permute.xlu0 %635
        %637 = vrot.lane.b32.xlu0 %v492, 6
        %v638 = vpop.permute.xlu0 %637
        %639 = vrot.lane.b32.xlu0 %v504, 6
        %v640 = vpop.permute.xlu0 %639
        %641 = vrot.lane.b32.xlu0 %v496, 6
        %v642 = vpop.permute.xlu0 %641
        %643 = vrot.lane.b32.xlu0 %v505, 6
        %v644 = vpop.permute.xlu0 %643
        %645 = vrot.lane.b32.xlu0 %v500, 6
        %v646 = vpop.permute.xlu0 %645
        %647 = vrot.lane.b32.xlu0 %v523, 6
        %v648 = vpop.permute.xlu0 %647
        %649 = vrot.lane.b32.xlu0 %v509, 6
        %v650 = vpop.permute.xlu0 %649
        %651 = vrot.lane.b32.xlu0 %v524, 6
        %v652 = vpop.permute.xlu0 %651
        %653 = vrot.lane.b32.xlu0 %v513, 6
        %v654 = vpop.permute.xlu0 %653
        %655 = vrot.lane.b32.xlu0 %v525, 6
        %v656 = vpop.permute.xlu0 %655
        %657 = vrot.lane.b32.xlu0 %v517, 6
        %v658 = vpop.permute.xlu0 %657
        %659 = vrot.lane.b32.xlu0 %v526, 6
        %v660 = vpop.permute.xlu0 %659
        %661 = vrot.lane.b32.xlu0 %v521, 6
        %v662 = vpop.permute.xlu0 %661
        %663 = vrot.lane.b32.xlu0 %v528, 6
        %v664 = vpop.permute.xlu0 %663
        %665 = vrot.lane.b32.xlu0 %v530, 6
        %v666 = vpop.permute.xlu0 %665
        %667 = vrot.lane.b32.xlu0 %v532, 6
        %v668 = vpop.permute.xlu0 %667
        %669 = vrot.lane.b32.xlu0 %v534, 6
        %v670 = vpop.permute.xlu0 %669
        %vm671 = vcmask 48128
        %v672 = vsel %vm671, %v568, %v570
        %v673 = vsel %vm671, %v572, %v574
        %v674 = vsel %vm671, %v576, %v578
        %v675 = vsel %vm671, %v580, %v582
        %v676 = vsel %vm671, %v584, %v586
        %v677 = vsel %vm671, %v588, %v590
        %v678 = vsel %vm671, %v592, %v594
        %v679 = vsel %vm671, %v596, %v598
        %v680 = vsel %vm671, %v600, %v602
        %v681 = vsel %vm671, %v604, %v606
        %v682 = vsel %vm671, %v608, %v610
        %v683 = vsel %vm671, %v612, %v614
        %v684 = vsel %vm671, %v616, %v618
        %v685 = vsel %vm671, %v620, %v622
        %v686 = vsel %vm671, %v624, %v626
        %v687 = vsel %vm671, %v628, %v630
        %v688 = vsel %vm671, %v632, %v634
        %v689 = vsel %vm671, %v636, %v638
        %v690 = vsel %vm671, %v640, %v642
        %v691 = vsel %vm671, %v644, %v646
        %v692 = vsel %vm671, %v648, %v650
        %v693 = vsel %vm671, %v652, %v654
        %v694 = vsel %vm671, %v656, %v658
        %v695 = vsel %vm671, %v660, %v662
        %vm724 = vcmask 785408
        %v726 = vsel %vm724, %v536, 0
        %v729 = vsel %vm724, %v538, 0
        %v732 = vsel %vm724, %v540, 0
        %v735 = vsel %vm724, %v542, 0
        %737 = vmatprep.subr.mxu0 0.0
        %738 = vmatpush1.msra.mxu0 %v687
        %739 = vmatprep.subr.mxu0 0.0
        %740 = vmatpush1.msra.mxu0 %v686
        %741 = vmatprep.subr.mxu0 0.0
        %742 = vmatpush1.msra.mxu0 %v685
        %743 = vmatprep.subr.mxu0 0.0
        %744 = vmatpush1.msra.mxu0 %v684
        %745 = vmatprep.subr.mxu0 0.0
        %746 = vmatpush1.msra.mxu0 %v683
        %747 = vmatprep.subr.mxu0 0.0
        %748 = vmatpush1.msra.mxu0 %v682
        %749 = vmatprep.subr.mxu0 0.0
        %750 = vmatpush1.msra.mxu0 %v681
        %751 = vmatprep.subr.mxu0 0.0
        %752 = vmatpush1.msra.mxu0 %v680
        %753 = vmatprep.subr.mxu0 0.0
        %754 = vmatpush1.msra.mxu0 %v679
        %755 = vmatprep.subr.mxu0 0.0
        %756 = vmatpush1.msra.mxu0 %v678
        %757 = vmatprep.subr.mxu0 0.0
        %758 = vmatpush1.msra.mxu0 %v677
        %759 = vmatprep.subr.mxu0 0.0
        %760 = vmatpush1.msra.mxu0 %v676
        %761 = vmatprep.subr.mxu0 0.0
        %762 = vmatpush1.msra.mxu0 %v675
        %763 = vmatprep.subr.mxu0 0.0
        %764 = vmatpush1.msra.mxu0 %v674
        %765 = vmatprep.subr.mxu0 0.0
        %766 = vmatpush1.msra.mxu0 %v673
        %767 = vmatprep.subr.mxu0 0.0
        %768 = vmatpush1.msra.mxu0 %v672
        %769 = vmatprep.subr.mxu0 0.0
        %770 = vmatpush2.msra.mxu0 0.0
        %771 = vmatprep.subr.mxu0 0.0
        %772 = vmatpush2.msra.mxu0 0.0
        %773 = vmatprep.subr.mxu0 0.0
        %774 = vmatpush2.msra.mxu0 0.0
        %775 = vmatprep.subr.mxu0 0.0
        %776 = vmatpush2.msra.mxu0 0.0
        %777 = vmatprep.subr.mxu0 0.0
        %778 = vmatpush2.msra.mxu0 %v670
        %779 = vmatprep.subr.mxu0 0.0
        %780 = vmatpush2.msra.mxu0 %v668
        %781 = vmatprep.subr.mxu0 0.0
        %782 = vmatpush2.msra.mxu0 %v666
        %783 = vmatprep.subr.mxu0 0.0
        %784 = vmatpush2.msra.mxu0 %v664
        %785 = vmatprep.subr.mxu0 0.0
        %786 = vmatpush2.msra.mxu0 %v695
        %787 = vmatprep.subr.mxu0 0.0
        %788 = vmatpush2.msra.mxu0 %v694
        %789 = vmatprep.subr.mxu0 0.0
        %790 = vmatpush2.msra.mxu0 %v693
        %791 = vmatprep.subr.mxu0 0.0
        %792 = vmatpush2.msra.mxu0 %v692
        %793 = vmatprep.subr.mxu0 0.0
        %794 = vmatpush2.msra.mxu0 %v691
        %795 = vmatprep.subr.mxu0 0.0
        %796 = vmatpush2.msra.mxu0 %v690
        %797 = vmatprep.subr.mxu0 0.0
        %798 = vmatpush2.msra.mxu0 %v689
        %799 = vmatprep.subr.mxu0 0.0
        %800 = vmatpush2.msra.mxu0 %v688
        %801 = vmatprep.mubr.f32.mxu0 %v726
        %802 = vmatmul.mubr.f32.gmra.mxu0 %v535
        %v803 = vpop.f32.mrf.mxu0
        %v804 = vadd.f32 %v550, %v803
        %v805 = vpop.f32.mrf.mxu0
        %806 = vmatprep.mubr.f32.mxu0 %v729
        %807 = vmatmul.mubr.f32.gmra.mxu0 %v537
        %v808 = vpop.f32.mrf.mxu0
        %v809 = vadd.f32 %v555, %v808
        %v810 = vpop.f32.mrf.mxu0
        %811 = vmatprep.mubr.f32.mxu0 %v732
        %812 = vmatmul.mubr.f32.gmra.mxu0 %v539
        %v813 = vpop.f32.mrf.mxu0
        %v814 = vadd.f32 %v560, %v813
        %v815 = vpop.f32.mrf.mxu0
        %816 = vmatprep.mubr.f32.mxu0 %v735
        %817 = vmatmul.mubr.f32.gmra.mxu0 %v541
        %v818 = vpop.f32.mrf.mxu0
        %v819 = vadd.f32 %v565, %v818
        %v820 = vpop.f32.mrf.mxu0
        %821 = vdwg.mxu0
        %vm822 = vcmp.ge.f32.partialorder %v804, 0.0
        %vm823 = vcmp.ge.f32.partialorder %v809, 0.0
        %vm824 = vcmp.ge.f32.partialorder %v814, 0.0
        %vm825 = vcmp.ge.f32.partialorder %v819, 0.0
        %v826 = vmul.f32 %v804, 0.1
        %v827 = vmul.f32 %v809, 0.1
        %v828 = vmul.f32 %v814, 0.1
        %v829 = vmul.f32 %v819, 0.1
        %v830 = vsel %vm822, %v804, %v826
        %v831 = vsel %vm823, %v809, %v827
        %v832 = vsel %vm824, %v814, %v828
        %v833 = vsel %vm825, %v819, %v829
        %v834 = vld [vmem:[%s4] sm:$0xff]
        %v835 = vld [vmem:[%s4 + $0x8] sm:$0xff]
        %v836 = vld [vmem:[%s4 + $0x10] sm:$0xff]
        %v837 = vld [vmem:[%s4 + $0x18] sm:$0xff]
        %v838 = vld [vmem:[%s5] sm:$0xff]
        %v839 = vld [vmem:[%s5 + $0x8] sm:$0xff]
        %v840 = vld [vmem:[%s5 + $0x10] sm:$0xff]
        %v841 = vld [vmem:[%s5 + $0x18] sm:$0xff]
        %843 = vset.pattern.permute.xlu0 0
        %844 = vperm.xlu0 %843, %v838
        %v845 = vpop.permute.xlu0 %844
        %848 = vset.pattern.permute.xlu0 0
        %849 = vperm.xlu0 %848, %v839
        %v850 = vpop.permute.xlu0 %849
        %853 = vset.pattern.permute.xlu0 0
        %854 = vperm.xlu0 %853, %v840
        %v855 = vpop.permute.xlu0 %854
        %858 = vset.pattern.permute.xlu0 0
        %859 = vperm.xlu0 %858, %v841
        %v860 = vpop.permute.xlu0 %859
        %vm862 = vcmask 261120
        %v864 = vsel %vm862, %v834, 0
        %v867 = vsel %vm862, %v835, 0
        %v870 = vsel %vm862, %v836, 0
        %v873 = vsel %vm862, %v837, 0
        %875 = vmatprep.subr.mxu0 0.0
        %876 = vmatpush1.msra.mxu0 0.0
        %877 = vmatprep.subr.mxu0 0.0
        %878 = vmatpush1.msra.mxu0 0.0
        %879 = vmatprep.subr.mxu0 0.0
        %880 = vmatpush1.msra.mxu0 0.0
        %881 = vmatprep.subr.mxu0 0.0
        %882 = vmatpush1.msra.mxu0 0.0
        %883 = vmatprep.subr.mxu0 0.0
        %884 = vmatpush1.msra.mxu0 0.0
        %885 = vmatprep.subr.mxu0 0.0
        %886 = vmatpush1.msra.mxu0 0.0
        %887 = vmatprep.subr.mxu0 0.0
        %888 = vmatpush1.msra.mxu0 0.0
        %889 = vmatprep.subr.mxu0 0.0
        %890 = vmatpush1.msra.mxu0 0.0
        %891 = vmatprep.subr.mxu0 0.0
        %892 = vmatpush1.msra.mxu0 0.0
        %893 = vmatprep.subr.mxu0 0.0
        %894 = vmatpush1.msra.mxu0 0.0
        %895 = vmatprep.subr.mxu0 0.0
        %896 = vmatpush1.msra.mxu0 0.0
        %897 = vmatprep.subr.mxu0 0.0
        %898 = vmatpush1.msra.mxu0 0.0
        %899 = vmatprep.subr.mxu0 0.0
        %900 = vmatpush1.msra.mxu0 %v833
        %901 = vmatprep.subr.mxu0 0.0
        %902 = vmatpush1.msra.mxu0 %v832
        %903 = vmatprep.subr.mxu0 0.0
        %904 = vmatpush1.msra.mxu0 %v831
        %905 = vmatprep.subr.mxu0 0.0
        %906 = vmatpush1.msra.mxu0 %v830
        %907 = vmatprep.subr.mxu0 0.0
        %908 = vmatpush2.msra.mxu0 0.0
        %909 = vmatprep.subr.mxu0 0.0
        %910 = vmatpush2.msra.mxu0 0.0
        %911 = vmatprep.subr.mxu0 0.0
        %912 = vmatpush2.msra.mxu0 0.0
        %913 = vmatprep.subr.mxu0 0.0
        %914 = vmatpush2.msra.mxu0 0.0
        %915 = vmatprep.subr.mxu0 0.0
        %916 = vmatpush2.msra.mxu0 0.0
        %917 = vmatprep.subr.mxu0 0.0
        %918 = vmatpush2.msra.mxu0 0.0
        %919 = vmatprep.subr.mxu0 0.0
        %920 = vmatpush2.msra.mxu0 0.0
        %921 = vmatprep.subr.mxu0 0.0
        %922 = vmatpush2.msra.mxu0 0.0
        %923 = vmatprep.subr.mxu0 0.0
        %924 = vmatpush2.msra.mxu0 0.0
        %925 = vmatprep.subr.mxu0 0.0
        %926 = vmatpush2.msra.mxu0 0.0
        %927 = vmatprep.subr.mxu0 0.0
        %928 = vmatpush2.msra.mxu0 0.0
        %929 = vmatprep.subr.mxu0 0.0
        %930 = vmatpush2.msra.mxu0 0.0
        %931 = vmatprep.subr.mxu0 0.0
        %932 = vmatpush2.msra.mxu0 0.0
        %933 = vmatprep.subr.mxu0 0.0
        %934 = vmatpush2.msra.mxu0 0.0
        %935 = vmatprep.subr.mxu0 0.0
        %936 = vmatpush2.msra.mxu0 0.0
        %937 = vmatprep.subr.mxu0 0.0
        %938 = vmatpush2.msra.mxu0 0.0
        %939 = vmatprep.mubr.f32.mxu0 0.0
        %940 = vmatmul.mubr.f32.gmra.mxu0 %v864
        %v941 = vpop.f32.mrf.mxu0
        %v942 = vadd.f32 %v845, %v941
        %v943 = vpop.f32.mrf.mxu0
        %944 = vmatprep.mubr.f32.mxu0 0.0
        %945 = vmatmul.mubr.f32.gmra.mxu0 %v867
        %v946 = vpop.f32.mrf.mxu0
        %v947 = vadd.f32 %v850, %v946
        %v948 = vpop.f32.mrf.mxu0
        %949 = vmatprep.mubr.f32.mxu0 0.0
        %950 = vmatmul.mubr.f32.gmra.mxu0 %v870
        %v951 = vpop.f32.mrf.mxu0
        %v952 = vadd.f32 %v855, %v951
        %v953 = vpop.f32.mrf.mxu0
        %954 = vmatprep.mubr.f32.mxu0 0.0
        %955 = vmatmul.mubr.f32.gmra.mxu0 %v873
        %v956 = vpop.f32.mrf.mxu0
        %v957 = vadd.f32 %v860, %v956
        %v958 = vpop.f32.mrf.mxu0
        %959 = vdwg.mxu0
        %v960 = vadd.f32 %v398, %v942
        %v961 = vadd.f32 %v399, %v947
        %v962 = vadd.f32 %v400, %v952
        %v963 = vadd.f32 %v401, %v957
        %964 = vst [vmem:[%s394] sm:$0xff] %v960
        %965 = vst [vmem:[%s394 + $0x8] sm:$0xff] %v961
        %966 = vst [vmem:[%s394 + $0x10] sm:$0xff] %v962
        %967 = vst [vmem:[%s394 + $0x18] sm:$0xff] %v963
        %s968 = sand.u32 %s188, 1
        %s969 = scalar_lea.sflag [#allocation5], %s968
        %s970 = sand.u32 %s188, 1
        %s971 = smul.addr %s970, 32
        %s972 = scalar_lea.vmem [#allocation4], %s971
        // Predicated region
        $region121: #{causal_residual_block1d.1} parent=111 // pred_check
          %p973 = pneg %p198
        $region122: #{causal_residual_block1d.1} parent=111 // pred_check_branch
          %975 = sbr.rel (%p973) target = $region124
        $region123: #{causal_residual_block1d.1} parent=111 // pred_region
          %s977 = ssub.s32 512, 512
          %978 = vsyncadd %s969, %s977
          %s979 = smul.addr %s24, 8
          %s980 = sadd.s32 %s25, %s979
          %s981 = smul.addr %s980, 128
          %s982 = scalar_lea.hbm %s6, %s981
          %s983 = sshll.u32 %s972, 4
          %s984 = int_to_ptr.vmem [resolvable:$true] %s983
          %989 = dma.vmem_to_hbm [thread:$0]  %s984, 512, %s982, %s969, 128, 256, 8
        $region124: #{causal_residual_block1d.1} parent=111 // pred_fallthru
          _
      $region112: #{causal_residual_block1d.1} parent=5 // pred_fallthru
        _
      %p990 = scmp.le.s32.totalorder 2, %s15
      // Predicated region
      $region125: #{causal_residual_block1d.1} parent=5 // pred_check
        %p991 = pneg %p990
      $region126: #{causal_residual_block1d.1} parent=5 // pred_check_branch
        %993 = sbr.rel (%p991) target = $region128
      $region127: #{causal_residual_block1d.1} parent=5 // pred_region
        %s994 = ssub.s32 %s15, 2
        // Predicated region
        $region129: #{causal_residual_block1d.1} parent=127 // pred_check
          %p995 = pneg %p204
        $region130: #{causal_residual_block1d.1} parent=127 // pred_check_branch
          %997 = sbr.rel (%p995) target = $region132
        $region131: #{causal_residual_block1d.1} parent=127 // pred_region
          %s998 = sand.u32 %s189, 1
          %s999 = scalar_lea.sflag [#allocation5], %s998
          %s1000 = sand.u32 %s189, 1
          %s1001 = smul.addr %s1000, 32
          %s1002 = scalar_lea.vmem [#allocation4], %s1001
          %1003 = dma.done %s999, 512
        $region132: #{causal_residual_block1d.1} parent=127 // pred_fallthru
          _
      $region128: #{causal_residual_block1d.1} parent=5 // pred_fallthru
        _
    $region6: #{causal_residual_block1d.1} parent=1 // loop_footer
      %s19 = sadd.s32 1, %s15
    $region7: #{causal_residual_block1d.1} parent=1 // loop_footer_branch
      %14 = sbr.rel target = $region3
    $region8: #{causal_residual_block1d.1} parent=1 // loop_exit
      _
    %1004 = vsyncpa [#allocation5], 1
    %s1005 = scalar_lea.sflag [#allocation5], 1
    %1006 = vsyncpa %s1005, 1

</llo_original>
